<compile_context>
chip_gen: v7x
topology: tpu7x:2x2x1
jax: 0.10.0
libtpu: 0.0.40
codegen_flags: <defaults>
</compile_context>

<pallas_src>
import functools

import jax
import jax.numpy as jnp
from jax.experimental import pallas as pl
from jax.experimental.pallas import tpu as pltpu


def pack_conv3x3_weight(w_hwio, W, c_pad=None, dtype=jnp.bfloat16):
    """Pack a (3,3,Cin,Cout) HWIO conv weight into 3 per-ky band matrices.

    Returns an array of shape (3, W*Cp, W*Cp) (Cp = padded channel count) such
    that, with activations laid out as rows of length W*Cp (lane = w*Cp + c),
    a 3x3 "same" stride-1 convolution of output row h is

        y[h] = a[h-1] @ band[0] + a[h] @ band[1] + a[h+1] @ band[2]

    Out-of-range kx taps (W boundary) are absent from the band structure, so no
    spatial padding is needed; out-of-range h+/-1 rows are zero-masked in the
    kernel.  Padded channels get zero weights so they stay identically zero.
    Pack once per weight (pure function of the weights) and reuse.
    """
    KH, KW, Cin, Cout = w_hwio.shape
    assert KH == 3 and KW == 3, "packing assumes a stride-1 SAME 3x3 conv"
    if c_pad is not None and c_pad > max(Cin, Cout):
        w_hwio = jnp.pad(
            w_hwio, ((0, 0), (0, 0), (0, c_pad - Cin), (0, c_pad - Cout)))
        Cin = Cout = c_pad
    wp = jnp.arange(W)[None, :, None]           # input column  w'
    wo = jnp.arange(W)[None, None, :]           # output column w
    kx = jnp.arange(KW)[:, None, None]          # kernel tap    kx
    sel = (wp == wo + kx - 1).astype(w_hwio.dtype)          # (KW, W, W)
    # band[ky, w', ci, w, co] = sum_kx sel[kx, w', w] * w[ky, kx, ci, co]
    band = jnp.einsum('kpw,ykio->ypiwo', sel, w_hwio)       # (3, W, Cin, W, Cout)
    return band.reshape(KH, W * Cin, W * Cout).astype(dtype)


def resnet_block2_kernel(x_ref, w1_ref, w2_ref, o_ref, *, H):
    """One batch-group per grid step.

    x_ref : (bg*H, W*Cp)      activations, lane-dense (W,Cp folded into lanes)
    w1_ref: (3, W*Cp, W*Cp)   bf16 per-ky band matrices of conv1
    w2_ref: (3, W*Cp, W*Cp)   bf16 per-ky band matrices of conv2
    o_ref : (bg*H, W*Cp)      output slab (dense, unmasked store)
    """
    M, WCp = x_ref.shape
    x = x_ref[...].astype(jnp.float32)          # residual path stays f32

    # Row masks: zero the h-1 / h+1 contributions across image boundaries
    # (each image occupies H consecutive rows of the slab).
    row = jax.lax.broadcasted_iota(jnp.int32, (M, WCp), 0)
    top = (row % H) == 0
    bot = (row % H) == (H - 1)

    def conv3x3(a, w_ref):
        # 3x3 SAME conv = three accumulated MXU matmuls against the ky-bands.
        # Row shifts via pltpu.roll (XLU); non-negative static shifts only.
        up = jnp.where(top, 0.0, pltpu.roll(a, 1, axis=0))       # a[h-1]
        dn = jnp.where(bot, 0.0, pltpu.roll(a, M - 1, axis=0))   # a[h+1]
        acc = jnp.dot(up.astype(jnp.bfloat16), w_ref[0],
                      preferred_element_type=jnp.float32)
        acc += jnp.dot(a.astype(jnp.bfloat16), w_ref[1],
                       preferred_element_type=jnp.float32)
        acc += jnp.dot(dn.astype(jnp.bfloat16), w_ref[2],
                       preferred_element_type=jnp.float32)
        return acc                                # (M, WCp) f32

    h1 = conv3x3(x, w1_ref)
    # ELU(alpha=1); clamp the exp argument so the untaken branch is finite.
    h1 = jnp.where(h1 > 0, h1, jnp.exp(jnp.minimum(h1, 0.0)) - 1.0)
    y = conv3x3(h1, w2_ref)
    o_ref[...] = (x + y).astype(o_ref.dtype)      # residual + dense store


def resnet_block2_nhwc(x_nhwc, w1_packed, w2_packed, *, block_batch=2):
    """NHWC ResnetBlock2 forward: out = x + conv2(elu(conv1(x))).

    w1_packed / w2_packed are the pre-packed (3, W*Cp, W*Cp) band matrices
    from pack_conv3x3_weight (packed once, outside the per-forward path).
    """
    B, H, W, C = x_nhwc.shape
    WCp = w1_packed.shape[-1]
    assert w1_packed.shape == (3, WCp, WCp) and w2_packed.shape == (3, WCp, WCp)
    assert WCp % W == 0
    Cp = WCp // W
    assert Cp >= C

    bg = block_batch if (B % block_batch == 0) else 1
    rows = bg * H
    assert (B // bg == 1) or (rows % 8 == 0), "row block must be sublane-aligned"

    xp = x_nhwc
    if Cp > C:
        xp = jnp.pad(x_nhwc, ((0, 0), (0, 0), (0, 0), (0, Cp - C)))
    x2 = xp.reshape(B * H, WCp)                  # free contiguous reshape

    # VMEM footprint here (~0.4 MiB incl. double buffering) is far below every
    # scoped default (v5e/v6e 16/32 MiB, v7x 32 MiB); set vmem_limit_bytes
    # explicitly only for larger W*C configs (v7x physical VMEM is 64 MiB).
    y2 = pl.pallas_call(
        functools.partial(resnet_block2_kernel, H=H),
        out_shape=jax.ShapeDtypeStruct((B * H, WCp), x_nhwc.dtype),
        grid_spec=pltpu.PrefetchScalarGridSpec(
            num_scalar_prefetch=0,
            grid=(B // bg,),
            in_specs=[
                pl.BlockSpec((rows, WCp), lambda g: (g, 0)),
                pl.BlockSpec((3, WCp, WCp), lambda g: (0, 0, 0)),
                pl.BlockSpec((3, WCp, WCp), lambda g: (0, 0, 0)),
            ],
            out_specs=pl.BlockSpec((rows, WCp), lambda g: (g, 0)),
        ),
        compiler_params=pltpu.CompilerParams(
            dimension_semantics=("parallel",)),
    )(x2, w1_packed, w2_packed)
    return y2.reshape(B, H, W, Cp)[..., :C]


def _reference_nhwc(x, w1_hwio, w2_hwio):
    """Pure-JAX f32 reference (lax conv, NHWC) for validation."""
    dn = ('NHWC', 'HWIO', 'NHWC')
    h = jax.lax.conv_general_dilated(x, w1_hwio, (1, 1), 'SAME',
                                     dimension_numbers=dn)
    h = jax.nn.elu(h)
    y = jax.lax.conv_general_dilated(h, w2_hwio, (1, 1), 'SAME',
                                     dimension_numbers=dn)
    return x + y


if __name__ == "__main__":
    key = jax.random.PRNGKey(0)
    k_x, k_w1, k_w2 = jax.random.split(key, 3)

    B, C, H, W = 2, 4, 16, 16          # dim = 4 (ResnetBlock2(dim))
    x = jax.random.normal(k_x, (B, H, W, C), dtype=jnp.float32)   # NHWC

    # Deterministic HWIO weights (== torch weight[cout,cin,ky,kx] transposed
    # to [ky,kx,cin,cout]), roughly Kaiming-scaled.
    fan_in = C * 3 * 3
    scale = (2.0 / fan_in) ** 0.5
    w1 = scale * jax.random.normal(k_w1, (3, 3, C, C), dtype=jnp.float32)
    w2 = scale * jax.random.normal(k_w2, (3, 3, C, C), dtype=jnp.float32)

    # Pack weights ONCE (hoisted out of the forward path); pad channels 4 -> 8
    # so the lane width W*Cp = 128 (dense, unmasked stores, full MXU N).
    Cp = 8
    w1p = jax.device_put(pack_conv3x3_weight(w1, W, c_pad=Cp))
    w2p = jax.device_put(pack_conv3x3_weight(w2, W, c_pad=Cp))

    fwd = jax.jit(resnet_block2_nhwc)
    y = fwd(x, w1p, w2p)
    y = jax.block_until_ready(y)

    y_ref = _reference_nhwc(x, w1, w2)
    assert y.shape == (B, H, W, C)
    # bf16 matmul operands with f32 accumulation -> looser tolerance than the
    # pure-f32 reference (observed error is well inside these bounds).
    assert jnp.allclose(y, y_ref, atol=1e-1, rtol=5e-2), "mismatch vs reference"

    print("KERNEL_OK")
</pallas_src>

<mosaic_0001>
module attributes {stable_mosaic.version = 11 : i64} {
  func.func @resnet_block2_kernel(%arg0: i32, %arg1: memref<32x128xf32, #tpu.memory_space<vmem>>, %arg2: memref<3x128x128xbf16, #tpu.memory_space<vmem>>, %arg3: memref<3x128x128xbf16, #tpu.memory_space<vmem>>, %arg4: memref<32x128xf32, #tpu.memory_space<vmem>>) attributes {dimension_semantics = [#tpu.dimension_semantics<parallel>], iteration_bounds = array<i64: 1>, scalar_prefetch = 0 : i64, scratch_operands = 0 : i64, tpu.core_type = #tpu.core_type<tc>, window_params = [{transform_indices = @transform_0, window_bounds = array<i64: 32, 128>}, {pipeline_mode = #tpu.pipeline_mode<synchronous>, transform_indices = @transform_1, window_bounds = array<i64: 3, 128, 128>}, {pipeline_mode = #tpu.pipeline_mode<synchronous>, transform_indices = @transform_2, window_bounds = array<i64: 3, 128, 128>}, {transform_indices = @transform_3, window_bounds = array<i64: 32, 128>}]} {
    %c0 = arith.constant 0 : index
    %c0_0 = arith.constant 0 : index
    %0 = vector.load %arg1[%c0, %c0_0] : memref<32x128xf32, #tpu.memory_space<vmem>>, vector<32x128xf32>
    %1 = tpu.iota {dimensions = array<i32: 0>} : vector<32x128xi32>
    %c16_i32 = arith.constant 16 : i32
    %c0_i32 = arith.constant 0 : i32
    %2 = arith.cmpi eq, %c16_i32, %c0_i32 : i32
    %c1_i32 = arith.constant 1 : i32
    %3 = arith.select %2, %c1_i32, %c16_i32 : i32
    %4 = vector.broadcast %3 : i32 to vector<32x128xi32>
    %5 = arith.remsi %1, %4 : vector<32x128xi32>
    %c0_i32_1 = arith.constant 0 : i32
    %6 = vector.broadcast %c0_i32_1 : i32 to vector<32x128xi32>
    %7 = arith.cmpi ne, %5, %6 : vector<32x128xi32>
    %c0_i32_2 = arith.constant 0 : i32
    %8 = vector.broadcast %c0_i32_2 : i32 to vector<32x128xi32>
    %9 = arith.cmpi slt, %5, %8 : vector<32x128xi32>
    %c0_i32_3 = arith.constant 0 : i32
    %10 = arith.cmpi slt, %3, %c0_i32_3 : i32
    %11 = vector.broadcast %10 : i1 to vector<32x128xi1>
    %12 = vector.broadcast %11 : vector<32x128xi1> to vector<32x128xi1>
    %13 = arith.xori %9, %12 : vector<32x128xi1>
    %14 = arith.andi %13, %7 : vector<32x128xi1>
    %15 = vector.broadcast %3 : i32 to vector<32x128xi32>
    %16 = arith.addi %5, %15 : vector<32x128xi32>
    %17 = arith.select %14, %16, %5 : vector<32x128xi1>, vector<32x128xi32>
    %c0_i32_4 = arith.constant 0 : i32
    %18 = vector.broadcast %c0_i32_4 : i32 to vector<32x128xi32>
    %19 = arith.cmpi eq, %17, %18 : vector<32x128xi32>
    %c16_i32_5 = arith.constant 16 : i32
    %c0_i32_6 = arith.constant 0 : i32
    %20 = arith.cmpi eq, %c16_i32_5, %c0_i32_6 : i32
    %c1_i32_7 = arith.constant 1 : i32
    %21 = arith.select %20, %c1_i32_7, %c16_i32_5 : i32
    %22 = vector.broadcast %21 : i32 to vector<32x128xi32>
    %23 = arith.remsi %1, %22 : vector<32x128xi32>
    %c0_i32_8 = arith.constant 0 : i32
    %24 = vector.broadcast %c0_i32_8 : i32 to vector<32x128xi32>
    %25 = arith.cmpi ne, %23, %24 : vector<32x128xi32>
    %c0_i32_9 = arith.constant 0 : i32
    %26 = vector.broadcast %c0_i32_9 : i32 to vector<32x128xi32>
    %27 = arith.cmpi slt, %23, %26 : vector<32x128xi32>
    %c0_i32_10 = arith.constant 0 : i32
    %28 = arith.cmpi slt, %21, %c0_i32_10 : i32
    %29 = vector.broadcast %28 : i1 to vector<32x128xi1>
    %30 = vector.broadcast %29 : vector<32x128xi1> to vector<32x128xi1>
    %31 = arith.xori %27, %30 : vector<32x128xi1>
    %32 = arith.andi %31, %25 : vector<32x128xi1>
    %33 = vector.broadcast %21 : i32 to vector<32x128xi32>
    %34 = arith.addi %23, %33 : vector<32x128xi32>
    %35 = arith.select %32, %34, %23 : vector<32x128xi1>, vector<32x128xi32>
    %c15_i32 = arith.constant 15 : i32
    %36 = vector.broadcast %c15_i32 : i32 to vector<32x128xi32>
    %37 = arith.cmpi eq, %35, %36 : vector<32x128xi32>
    %c1_i32_11 = arith.constant 1 : i32
    %38 = tpu.dynamic_rotate %0 by %c1_i32_11 dim 0 : vector<32x128xf32>, i32 -> vector<32x128xf32>
    %cst = arith.constant 0.000000e+00 : f32
    %39 = vector.broadcast %cst : f32 to vector<32x128xf32>
    %40 = arith.select %19, %39, %38 : vector<32x128xi1>, vector<32x128xf32>
    %c31_i32 = arith.constant 31 : i32
    %41 = tpu.dynamic_rotate %0 by %c31_i32 dim 0 : vector<32x128xf32>, i32 -> vector<32x128xf32>
    %cst_12 = arith.constant 0.000000e+00 : f32
    %42 = vector.broadcast %cst_12 : f32 to vector<32x128xf32>
    %43 = arith.select %37, %42, %41 : vector<32x128xi1>, vector<32x128xf32>
    %44 = arith.truncf %40 : vector<32x128xf32> to vector<32x128xbf16>
    %c0_13 = arith.constant 0 : index
    %c0_14 = arith.constant 0 : index
    %c0_15 = arith.constant 0 : index
    %45 = vector.load %arg2[%c0_13, %c0_14, %c0_15] : memref<3x128x128xbf16, #tpu.memory_space<vmem>>, vector<1x128x128xbf16>
    %46 = vector.shape_cast %45 : vector<1x128x128xbf16> to vector<128x128xbf16>
    %cst_16 = arith.constant dense<0.000000e+00> : vector<32x128xf32>
    %47 = tpu.matmul %44, %46, %cst_16 {dimension_numbers = #tpu.dot_dimension_numbers<[1], [0], [0], [1], [0, 0, 1, 1], [], []>} : vector<32x128xbf16>, vector<128x128xbf16>, vector<32x128xf32> -> vector<32x128xf32>
    %48 = arith.truncf %0 : vector<32x128xf32> to vector<32x128xbf16>
    %c1 = arith.constant 1 : index
    %c0_17 = arith.constant 0 : index
    %c0_18 = arith.constant 0 : index
    %49 = vector.load %arg2[%c1, %c0_17, %c0_18] : memref<3x128x128xbf16, #tpu.memory_space<vmem>>, vector<1x128x128xbf16>
    %50 = vector.shape_cast %49 : vector<1x128x128xbf16> to vector<128x128xbf16>
    %cst_19 = arith.constant dense<0.000000e+00> : vector<32x128xf32>
    %51 = tpu.matmul %48, %50, %cst_19 {dimension_numbers = #tpu.dot_dimension_numbers<[1], [0], [0], [1], [0, 0, 1, 1], [], []>} : vector<32x128xbf16>, vector<128x128xbf16>, vector<32x128xf32> -> vector<32x128xf32>
    %52 = arith.addf %47, %51 : vector<32x128xf32>
    %53 = arith.truncf %43 : vector<32x128xf32> to vector<32x128xbf16>
    %c2 = arith.constant 2 : index
    %c0_20 = arith.constant 0 : index
    %c0_21 = arith.constant 0 : index
    %54 = vector.load %arg2[%c2, %c0_20, %c0_21] : memref<3x128x128xbf16, #tpu.memory_space<vmem>>, vector<1x128x128xbf16>
    %55 = vector.shape_cast %54 : vector<1x128x128xbf16> to vector<128x128xbf16>
    %cst_22 = arith.constant dense<0.000000e+00> : vector<32x128xf32>
    %56 = tpu.matmul %53, %55, %cst_22 {dimension_numbers = #tpu.dot_dimension_numbers<[1], [0], [0], [1], [0, 0, 1, 1], [], []>} : vector<32x128xbf16>, vector<128x128xbf16>, vector<32x128xf32> -> vector<32x128xf32>
    %57 = arith.addf %52, %56 : vector<32x128xf32>
    %cst_23 = arith.constant 0.000000e+00 : f32
    %58 = vector.broadcast %cst_23 : f32 to vector<32x128xf32>
    %59 = arith.cmpf ogt, %57, %58 : vector<32x128xf32>
    %cst_24 = arith.constant 0.000000e+00 : f32
    %60 = vector.broadcast %cst_24 : f32 to vector<32x128xf32>
    %61 = arith.minimumf %57, %60 : vector<32x128xf32>
    %62 = math.exp %61 : vector<32x128xf32>
    %cst_25 = arith.constant 1.000000e+00 : f32
    %63 = vector.broadcast %cst_25 : f32 to vector<32x128xf32>
    %64 = arith.subf %62, %63 : vector<32x128xf32>
    %65 = arith.select %59, %57, %64 : vector<32x128xi1>, vector<32x128xf32>
    %c1_i32_26 = arith.constant 1 : i32
    %66 = tpu.dynamic_rotate %65 by %c1_i32_26 dim 0 : vector<32x128xf32>, i32 -> vector<32x128xf32>
    %cst_27 = arith.constant 0.000000e+00 : f32
    %67 = vector.broadcast %cst_27 : f32 to vector<32x128xf32>
    %68 = arith.select %19, %67, %66 : vector<32x128xi1>, vector<32x128xf32>
    %c31_i32_28 = arith.constant 31 : i32
    %69 = tpu.dynamic_rotate %65 by %c31_i32_28 dim 0 : vector<32x128xf32>, i32 -> vector<32x128xf32>
    %cst_29 = arith.constant 0.000000e+00 : f32
    %70 = vector.broadcast %cst_29 : f32 to vector<32x128xf32>
    %71 = arith.select %37, %70, %69 : vector<32x128xi1>, vector<32x128xf32>
    %72 = arith.truncf %68 : vector<32x128xf32> to vector<32x128xbf16>
    %c0_30 = arith.constant 0 : index
    %c0_31 = arith.constant 0 : index
    %c0_32 = arith.constant 0 : index
    %73 = vector.load %arg3[%c0_30, %c0_31, %c0_32] : memref<3x128x128xbf16, #tpu.memory_space<vmem>>, vector<1x128x128xbf16>
    %74 = vector.shape_cast %73 : vector<1x128x128xbf16> to vector<128x128xbf16>
    %cst_33 = arith.constant dense<0.000000e+00> : vector<32x128xf32>
    %75 = tpu.matmul %72, %74, %cst_33 {dimension_numbers = #tpu.dot_dimension_numbers<[1], [0], [0], [1], [0, 0, 1, 1], [], []>} : vector<32x128xbf16>, vector<128x128xbf16>, vector<32x128xf32> -> vector<32x128xf32>
    %76 = arith.truncf %65 : vector<32x128xf32> to vector<32x128xbf16>
    %c1_34 = arith.constant 1 : index
    %c0_35 = arith.constant 0 : index
    %c0_36 = arith.constant 0 : index
    %77 = vector.load %arg3[%c1_34, %c0_35, %c0_36] : memref<3x128x128xbf16, #tpu.memory_space<vmem>>, vector<1x128x128xbf16>
    %78 = vector.shape_cast %77 : vector<1x128x128xbf16> to vector<128x128xbf16>
    %cst_37 = arith.constant dense<0.000000e+00> : vector<32x128xf32>
    %79 = tpu.matmul %76, %78, %cst_37 {dimension_numbers = #tpu.dot_dimension_numbers<[1], [0], [0], [1], [0, 0, 1, 1], [], []>} : vector<32x128xbf16>, vector<128x128xbf16>, vector<32x128xf32> -> vector<32x128xf32>
    %80 = arith.addf %75, %79 : vector<32x128xf32>
    %81 = arith.truncf %71 : vector<32x128xf32> to vector<32x128xbf16>
    %c2_38 = arith.constant 2 : index
    %c0_39 = arith.constant 0 : index
    %c0_40 = arith.constant 0 : index
    %82 = vector.load %arg3[%c2_38, %c0_39, %c0_40] : memref<3x128x128xbf16, #tpu.memory_space<vmem>>, vector<1x128x128xbf16>
    %83 = vector.shape_cast %82 : vector<1x128x128xbf16> to vector<128x128xbf16>
    %cst_41 = arith.constant dense<0.000000e+00> : vector<32x128xf32>
    %84 = tpu.matmul %81, %83, %cst_41 {dimension_numbers = #tpu.dot_dimension_numbers<[1], [0], [0], [1], [0, 0, 1, 1], [], []>} : vector<32x128xbf16>, vector<128x128xbf16>, vector<32x128xf32> -> vector<32x128xf32>
    %85 = arith.addf %80, %84 : vector<32x128xf32>
    %86 = arith.addf %0, %85 : vector<32x128xf32>
    %c0_42 = arith.constant 0 : index
    %c0_43 = arith.constant 0 : index
    %87 = vector.load %arg4[%c0_42, %c0_43] : memref<32x128xf32, #tpu.memory_space<vmem>>, vector<32x128xf32>
    tpu.vector_store %arg4[%c0_42, %c0_43], %86 {strides = array<i32>} : memref<32x128xf32, #tpu.memory_space<vmem>>, vector<32x128xf32>,
    return
  }
  func.func @transform_0(%arg0: i32) -> (i32, i32) {
    %c0_i32 = arith.constant 0 : i32
    %c0_i32_0 = arith.constant 0 : i32
    return %arg0, %c0_i32 : i32, i32
  }
  func.func @transform_1(%arg0: i32) -> (i32, i32, i32) {
    %c0_i32 = arith.constant 0 : i32
    %c0_i32_0 = arith.constant 0 : i32
    %c0_i32_1 = arith.constant 0 : i32
    %c0_i32_2 = arith.constant 0 : i32
    return %c0_i32, %c0_i32_0, %c0_i32_1 : i32, i32, i32
  }
  func.func @transform_2(%arg0: i32) -> (i32, i32, i32) {
    %c0_i32 = arith.constant 0 : i32
    %c0_i32_0 = arith.constant 0 : i32
    %c0_i32_1 = arith.constant 0 : i32
    %c0_i32_2 = arith.constant 0 : i32
    return %c0_i32, %c0_i32_0, %c0_i32_1 : i32, i32, i32
  }
  func.func @transform_3(%arg0: i32) -> (i32, i32) {
    %c0_i32 = arith.constant 0 : i32
    %c0_i32_0 = arith.constant 0 : i32
    return %arg0, %c0_i32 : i32, i32
  }
}

</mosaic_0001>

<llo_original>
// kernel: resnet_block2_nhwc.1
$region0: #{resnet_block2_nhwc.1}
  #allocation0 [shape = 'u32[]', space=smem, size = 0x4, offset = 0x4, fixed_abs, tag = 'smem constant byte address 0x4 - core index']
  #allocation1 [shape = 'u32[144,128]{1,0:T(1,128)}', space=vmem, size = 0x12000, scoped, tag = 'internal scratch']
  %s0 = inlined_call_operand.vmem [shape: f32[32,128], index: 0, kind: input, shape index: {}]
  %s1 = inlined_call_operand.vmem [shape: bf16[3,128,128], index: 1, kind: input, shape index: {}]
  %s2 = inlined_call_operand.vmem [shape: bf16[3,128,128], index: 2, kind: input, shape index: {}]
  %s3 = inlined_call_operand.vmem [shape: f32[32,128], index: 3, kind: output, shape index: {}]
  %s4 = sld [smem:[#allocation0]]
  $region22: #{resnet_block2_nhwc.1} parent=0
    _
  %s6 = ssub.s32 1, %s4
  %s7 = scalar_select 0, %s6, %s4
  // Predicated region
  $region2: #{resnet_block2_nhwc.1} parent=0 // pred_check
    _
  $region3: #{resnet_block2_nhwc.1} parent=0 // pred_check_branch
    %9 = sbr.rel (0) target = $region5
  $region4: #{resnet_block2_nhwc.1} parent=0 // pred_region
    _
  $region5: #{resnet_block2_nhwc.1} parent=0 // pred_fallthru
    _
  // Predicated region
  $region6: #{resnet_block2_nhwc.1} parent=0 // pred_check
    _
  $region7: #{resnet_block2_nhwc.1} parent=0 // pred_check_branch
    %11 = sbr.rel (0) target = $region9
  $region8: #{resnet_block2_nhwc.1} parent=0 // pred_region
    _
  $region9: #{resnet_block2_nhwc.1} parent=0 // pred_fallthru
    _
  // Predicated region
  $region10: #{resnet_block2_nhwc.1} parent=0 // pred_check
    _
  $region11: #{resnet_block2_nhwc.1} parent=0 // pred_check_branch
    %13 = sbr.rel (0) target = $region13
  $region12: #{resnet_block2_nhwc.1} parent=0 // pred_region
    _
  $region13: #{resnet_block2_nhwc.1} parent=0 // pred_fallthru
    _
  %v15 = vld [vmem:[%s0] sm:$0xff]
  %v16 = vld [vmem:[%s0 + $0x8] sm:$0xff]
  %v17 = vld [vmem:[%s0 + $0x10] sm:$0xff]
  %v18 = vld [vmem:[%s0 + $0x18] sm:$0xff]
  %v19 = vlaneseq
  %v20 = vshrl.u32 %v19, 7
  %v21 = vadd.s32 %v20, 8
  %v22 = vadd.s32 %v20, 16
  %v23 = vadd.s32 %v20, 24
  %vm24 = vcmp.lt.s32.totalorder %v20, 0
  %v25 = vsub.s32 0, %v20
  %v26 = vsel %vm24, %v25, %v20
  %v27 = vshrl.u32 %v26, 4
  %v28 = vand.u32 %v26, 15
  %v29 = vsub.s32 0, %v28
  %v30 = vsel %vm24, %v29, %v28
  %vm31 = vcmp.lt.s32.totalorder %v21, 0
  %v32 = vsub.s32 0, %v21
  %v33 = vsel %vm31, %v32, %v21
  %v34 = vshrl.u32 %v33, 4
  %v35 = vand.u32 %v33, 15
  %v36 = vsub.s32 0, %v35
  %v37 = vsel %vm31, %v36, %v35
  %vm38 = vcmp.lt.s32.totalorder %v22, 0
  %v39 = vsub.s32 0, %v22
  %v40 = vsel %vm38, %v39, %v22
  %v41 = vshrl.u32 %v40, 4
  %v42 = vand.u32 %v40, 15
  %v43 = vsub.s32 0, %v42
  %v44 = vsel %vm38, %v43, %v42
  %vm45 = vcmp.lt.s32.totalorder %v23, 0
  %v46 = vsub.s32 0, %v23
  %v47 = vsel %vm45, %v46, %v23
  %v48 = vshrl.u32 %v47, 4
  %v49 = vand.u32 %v47, 15
  %v50 = vsub.s32 0, %v49
  %v51 = vsel %vm45, %v50, %v49
  %vm52 = vcmp.ne.s32.totalorder %v30, 0
  %vm53 = vcmp.ne.s32.totalorder %v37, 0
  %vm54 = vcmp.ne.s32.totalorder %v44, 0
  %vm55 = vcmp.ne.s32.totalorder %v51, 0
  %vm56 = vcmp.lt.s32.totalorder %v30, 0
  %vm57 = vcmp.lt.s32.totalorder %v37, 0
  %vm58 = vcmp.lt.s32.totalorder %v44, 0
  %vm59 = vcmp.lt.s32.totalorder %v51, 0
  %vm60 = vmand %vm56, %vm52
  %vm61 = vmand %vm57, %vm53
  %vm62 = vmand %vm58, %vm54
  %vm63 = vmand %vm59, %vm55
  %v64 = vadd.s32 %v30, 16
  %v65 = vadd.s32 %v37, 16
  %v66 = vadd.s32 %v44, 16
  %v67 = vadd.s32 %v51, 16
  %v68 = vsel %vm60, %v64, %v30
  %v69 = vsel %vm61, %v65, %v37
  %v70 = vsel %vm62, %v66, %v44
  %v71 = vsel %vm63, %v67, %v51
  %vm72 = vcmp.eq.s32.totalorder %v68, 0
  %vm73 = vcmp.eq.s32.totalorder %v69, 0
  %vm74 = vcmp.eq.s32.totalorder %v70, 0
  %vm75 = vcmp.eq.s32.totalorder %v71, 0
  %vm76 = vcmp.eq.s32.totalorder %v68, 15
  %vm77 = vcmp.eq.s32.totalorder %v69, 15
  %vm78 = vcmp.eq.s32.totalorder %v70, 15
  %vm79 = vcmp.eq.s32.totalorder %v71, 15
  %v80 = vrot.slane %v15, 7
  %v81 = vrot.slane %v16, 7
  %v82 = vrot.slane %v17, 7
  %v83 = vrot.slane %v18, 7
  %vm84 = vcmp.lt.s32.totalorder %v20, 1
  %v85 = vsel %vm84, %v82, %v83
  %v86 = vsel %vm84, %v81, %v82
  %v87 = vsel %vm84, %v80, %v81
  %v88 = vsel %vm84, %v83, %v80
  %v89 = vsel %vm72, 0.0, %v88
  %v90 = vsel %vm73, 0.0, %v87
  %v91 = vsel %vm74, 0.0, %v86
  %v92 = vsel %vm75, 0.0, %v85
  %v93 = vrot.slane %v15, 1
  %v94 = vrot.slane %v16, 1
  %v95 = vrot.slane %v17, 1
  %v96 = vrot.slane %v18, 1
  %vm97 = vcmp.lt.s32.totalorder %v20, 7
  %v98 = vsel %vm97, %v95, %v96
  %v99 = vsel %vm97, %v94, %v95
  %v100 = vsel %vm97, %v93, %v94
  %v101 = vsel %vm97, %v96, %v93
  %v102 = vsel %vm76, 0.0, %v100
  %v103 = vsel %vm77, 0.0, %v99
  %v104 = vsel %vm78, 0.0, %v98
  %v105 = vsel %vm79, 0.0, %v101
  %v106 = vpack.c.bf16 %v90, %v89
  %v107 = vpack.c.bf16 %v92, %v91
  %v108 = vld [vmem:[%s1] sm:$0xf]
  %v109 = vld [vmem:[%s1 + $0x4] sm:$0xf]
  %v110 = vld [vmem:[%s1 + $0x8] sm:$0xf]
  %v111 = vld [vmem:[%s1 + $0xc] sm:$0xf]
  %v112 = vld [vmem:[%s1 + $0x10] sm:$0xf]
  %v113 = vld [vmem:[%s1 + $0x14] sm:$0xf]
  %v114 = vld [vmem:[%s1 + $0x18] sm:$0xf]
  %v115 = vld [vmem:[%s1 + $0x1c] sm:$0xf]
  %v116 = vld [vmem:[%s1 + $0x20] sm:$0xf]
  %v117 = vld [vmem:[%s1 + $0x24] sm:$0xf]
  %v118 = vld [vmem:[%s1 + $0x28] sm:$0xf]
  %v119 = vld [vmem:[%s1 + $0x2c] sm:$0xf]
  %v120 = vld [vmem:[%s1 + $0x30] sm:$0xf]
  %v121 = vld [vmem:[%s1 + $0x34] sm:$0xf]
  %v122 = vld [vmem:[%s1 + $0x38] sm:$0xf]
  %v123 = vld [vmem:[%s1 + $0x3c] sm:$0xf]
  %v124 = vpack.c.bf16 %v16, %v15
  %v125 = vpack.c.bf16 %v18, %v17
  %s126 = scalar_lea.vmem %s1, 64
  %v127 = vld [vmem:[%s126] sm:$0xf]
  %v128 = vld [vmem:[%s126 + $0x4] sm:$0xf]
  %v129 = vld [vmem:[%s126 + $0x8] sm:$0xf]
  %v130 = vld [vmem:[%s126 + $0xc] sm:$0xf]
  %v131 = vld [vmem:[%s126 + $0x10] sm:$0xf]
  %v132 = vld [vmem:[%s126 + $0x14] sm:$0xf]
  %v133 = vld [vmem:[%s126 + $0x18] sm:$0xf]
  %v134 = vld [vmem:[%s126 + $0x1c] sm:$0xf]
  %v135 = vld [vmem:[%s126 + $0x20] sm:$0xf]
  %v136 = vld [vmem:[%s126 + $0x24] sm:$0xf]
  %v137 = vld [vmem:[%s126 + $0x28] sm:$0xf]
  %v138 = vld [vmem:[%s126 + $0x2c] sm:$0xf]
  %v139 = vld [vmem:[%s126 + $0x30] sm:$0xf]
  %v140 = vld [vmem:[%s126 + $0x34] sm:$0xf]
  %v141 = vld [vmem:[%s126 + $0x38] sm:$0xf]
  %v142 = vld [vmem:[%s126 + $0x3c] sm:$0xf]
  %v159 = vunpack.c.l.b16 %v127
  %v160 = vunpack.c.l.b16 %v128
  %v161 = vunpack.c.l.b16 %v129
  %v162 = vunpack.c.l.b16 %v130
  %v163 = vunpack.c.l.b16 %v131
  %v164 = vunpack.c.l.b16 %v132
  %v165 = vunpack.c.l.b16 %v133
  %v166 = vunpack.c.l.b16 %v134
  %v167 = vunpack.c.l.b16 %v135
  %v168 = vunpack.c.l.b16 %v136
  %v169 = vunpack.c.l.b16 %v137
  %v170 = vunpack.c.l.b16 %v138
  %v171 = vunpack.c.l.b16 %v139
  %v172 = vunpack.c.l.b16 %v140
  %v173 = vunpack.c.l.b16 %v141
  %v174 = vunpack.c.l.b16 %v142
  %v175 = vpack.c.b16 %v160, %v159
  %v176 = vpack.c.b16 %v162, %v161
  %v177 = vpack.c.b16 %v164, %v163
  %v178 = vpack.c.b16 %v166, %v165
  %v179 = vpack.c.b16 %v168, %v167
  %v180 = vpack.c.b16 %v170, %v169
  %v181 = vpack.c.b16 %v172, %v171
  %v182 = vpack.c.b16 %v174, %v173
  %191 = vmatprep.subr.bf16.mxu0 0
  %192 = vmatpush1.bf16.msra.mxu0 %v175
  %193 = vmatprep.subr.bf16.mxu0 0
  %194 = vmatpush1.bf16.msra.mxu0 %v176
  %195 = vmatprep.subr.bf16.mxu0 0
  %196 = vmatpush1.bf16.msra.mxu0 %v177
  %197 = vmatprep.subr.bf16.mxu0 0
  %198 = vmatpush1.bf16.msra.mxu0 %v178
  %199 = vmatprep.subr.bf16.mxu0 0
  %200 = vmatpush1.bf16.msra.mxu0 %v179
  %201 = vmatprep.subr.bf16.mxu0 0
  %202 = vmatpush1.bf16.msra.mxu0 %v180
  %203 = vmatprep.subr.bf16.mxu0 0
  %204 = vmatpush1.bf16.msra.mxu0 %v181
  %205 = vmatprep.subr.bf16.mxu0 0
  %206 = vmatpush1.bf16.msra.mxu0 %v182
  %207 = vmatprep.subr.bf16.mxu0 0
  %208 = vmatpush1.bf16.msra.mxu0 0
  %209 = vmatprep.subr.bf16.mxu0 0
  %210 = vmatpush1.bf16.msra.mxu0 0
  %211 = vmatprep.subr.bf16.mxu0 0
  %212 = vmatpush1.bf16.msra.mxu0 0
  %213 = vmatprep.subr.bf16.mxu0 0
  %214 = vmatpush1.bf16.msra.mxu0 0
  %215 = vmatprep.subr.bf16.mxu0 0
  %216 = vmatpush1.bf16.msra.mxu0 0
  %217 = vmatprep.subr.bf16.mxu0 0
  %218 = vmatpush1.bf16.msra.mxu0 0
  %219 = vmatprep.subr.bf16.mxu0 0
  %220 = vmatpush1.bf16.msra.mxu0 0
  %221 = vmatprep.subr.bf16.mxu0 0
  %222 = vmatpush1.bf16.msra.mxu0 0
  %223 = vmatprep.mubr.bf16.mxu0 0
  %224 = vmatmul.mubr.bf16.gmra.mrb[0].mxu0 %v124
  %v225 = vpop.f32.mrb[0].mxu0
  %v226 = vadd.f32 0.0, %v225
  %v227 = vpop.f32.mrb[0].mxu0
  %v228 = vpop.f32.mrb[0].mxu0
  %v229 = vadd.f32 0.0, %v228
  %v230 = vpop.f32.mrb[0].mxu0
  %231 = vmatprep.mubr.bf16.mxu0 0
  %232 = vmatmul.mubr.bf16.gmra.mrb[0].mxu0 %v125
  %v233 = vpop.f32.mrb[0].mxu0
  %v234 = vadd.f32 0.0, %v233
  %v235 = vpop.f32.mrb[0].mxu0
  %v236 = vpop.f32.mrb[0].mxu0
  %v237 = vadd.f32 0.0, %v236
  %v238 = vpop.f32.mrb[0].mxu0
  %239 = vdwg.mxu0
  %v256 = vunpack.c.l.b16 %v108
  %v257 = vunpack.c.l.b16 %v109
  %v258 = vunpack.c.l.b16 %v110
  %v259 = vunpack.c.l.b16 %v111
  %v260 = vunpack.c.l.b16 %v112
  %v261 = vunpack.c.l.b16 %v113
  %v262 = vunpack.c.l.b16 %v114
  %v263 = vunpack.c.l.b16 %v115
  %v264 = vunpack.c.l.b16 %v116
  %v265 = vunpack.c.l.b16 %v117
  %v266 = vunpack.c.l.b16 %v118
  %v267 = vunpack.c.l.b16 %v119
  %v268 = vunpack.c.l.b16 %v120
  %v269 = vunpack.c.l.b16 %v121
  %v270 = vunpack.c.l.b16 %v122
  %v271 = vunpack.c.l.b16 %v123
  %v272 = vpack.c.b16 %v257, %v256
  %v273 = vpack.c.b16 %v259, %v258
  %v274 = vpack.c.b16 %v261, %v260
  %v275 = vpack.c.b16 %v263, %v262
  %v276 = vpack.c.b16 %v265, %v264
  %v277 = vpack.c.b16 %v267, %v266
  %v278 = vpack.c.b16 %v269, %v268
  %v279 = vpack.c.b16 %v271, %v270
  %288 = vmatprep.subr.bf16.mxu0 0
  %289 = vmatpush1.bf16.msra.mxu0 %v272
  %290 = vmatprep.subr.bf16.mxu0 0
  %291 = vmatpush1.bf16.msra.mxu0 %v273
  %292 = vmatprep.subr.bf16.mxu0 0
  %293 = vmatpush1.bf16.msra.mxu0 %v274
  %294 = vmatprep.subr.bf16.mxu0 0
  %295 = vmatpush1.bf16.msra.mxu0 %v275
  %296 = vmatprep.subr.bf16.mxu0 0
  %297 = vmatpush1.bf16.msra.mxu0 %v276
  %298 = vmatprep.subr.bf16.mxu0 0
  %299 = vmatpush1.bf16.msra.mxu0 %v277
  %300 = vmatprep.subr.bf16.mxu0 0
  %301 = vmatpush1.bf16.msra.mxu0 %v278
  %302 = vmatprep.subr.bf16.mxu0 0
  %303 = vmatpush1.bf16.msra.mxu0 %v279
  %304 = vmatprep.subr.bf16.mxu0 0
  %305 = vmatpush1.bf16.msra.mxu0 0
  %306 = vmatprep.subr.bf16.mxu0 0
  %307 = vmatpush1.bf16.msra.mxu0 0
  %308 = vmatprep.subr.bf16.mxu0 0
  %309 = vmatpush1.bf16.msra.mxu0 0
  %310 = vmatprep.subr.bf16.mxu0 0
  %311 = vmatpush1.bf16.msra.mxu0 0
  %312 = vmatprep.subr.bf16.mxu0 0
  %313 = vmatpush1.bf16.msra.mxu0 0
  %314 = vmatprep.subr.bf16.mxu0 0
  %315 = vmatpush1.bf16.msra.mxu0 0
  %316 = vmatprep.subr.bf16.mxu0 0
  %317 = vmatpush1.bf16.msra.mxu0 0
  %318 = vmatprep.subr.bf16.mxu0 0
  %319 = vmatpush1.bf16.msra.mxu0 0
  %320 = vmatprep.mubr.bf16.mxu0 0
  %321 = vmatmul.mubr.bf16.gmra.mrb[0].mxu0 %v106
  %v322 = vpop.f32.mrb[0].mxu0
  %v323 = vadd.f32 %v226, %v322
  %v324 = vpop.f32.mrb[0].mxu0
  %v325 = vpop.f32.mrb[0].mxu0
  %v326 = vadd.f32 %v229, %v325
  %v327 = vpop.f32.mrb[0].mxu0
  %328 = vmatprep.mubr.bf16.mxu0 0
  %329 = vmatmul.mubr.bf16.gmra.mrb[0].mxu0 %v107
  %v330 = vpop.f32.mrb[0].mxu0
  %v331 = vadd.f32 %v234, %v330
  %v332 = vpop.f32.mrb[0].mxu0
  %v333 = vpop.f32.mrb[0].mxu0
  %v334 = vadd.f32 %v237, %v333
  %v335 = vpop.f32.mrb[0].mxu0
  %336 = vdwg.mxu0
  %v337 = vpack.c.bf16 %v103, %v102
  %v338 = vpack.c.bf16 %v105, %v104
  %s339 = scalar_lea.vmem %s1, 128
  %v340 = vld [vmem:[%s339] sm:$0xf]
  %v341 = vld [vmem:[%s339 + $0x4] sm:$0xf]
  %v342 = vld [vmem:[%s339 + $0x8] sm:$0xf]
  %v343 = vld [vmem:[%s339 + $0xc] sm:$0xf]
  %v344 = vld [vmem:[%s339 + $0x10] sm:$0xf]
  %v345 = vld [vmem:[%s339 + $0x14] sm:$0xf]
  %v346 = vld [vmem:[%s339 + $0x18] sm:$0xf]
  %v347 = vld [vmem:[%s339 + $0x1c] sm:$0xf]
  %v348 = vld [vmem:[%s339 + $0x20] sm:$0xf]
  %v349 = vld [vmem:[%s339 + $0x24] sm:$0xf]
  %v350 = vld [vmem:[%s339 + $0x28] sm:$0xf]
  %v351 = vld [vmem:[%s339 + $0x2c] sm:$0xf]
  %v352 = vld [vmem:[%s339 + $0x30] sm:$0xf]
  %v353 = vld [vmem:[%s339 + $0x34] sm:$0xf]
  %v354 = vld [vmem:[%s339 + $0x38] sm:$0xf]
  %v355 = vld [vmem:[%s339 + $0x3c] sm:$0xf]
  %v372 = vunpack.c.l.b16 %v340
  %v373 = vunpack.c.l.b16 %v341
  %v374 = vunpack.c.l.b16 %v342
  %v375 = vunpack.c.l.b16 %v343
  %v376 = vunpack.c.l.b16 %v344
  %v377 = vunpack.c.l.b16 %v345
  %v378 = vunpack.c.l.b16 %v346
  %v379 = vunpack.c.l.b16 %v347
  %v380 = vunpack.c.l.b16 %v348
  %v381 = vunpack.c.l.b16 %v349
  %v382 = vunpack.c.l.b16 %v350
  %v383 = vunpack.c.l.b16 %v351
  %v384 = vunpack.c.l.b16 %v352
  %v385 = vunpack.c.l.b16 %v353
  %v386 = vunpack.c.l.b16 %v354
  %v387 = vunpack.c.l.b16 %v355
  %v388 = vpack.c.b16 %v373, %v372
  %v389 = vpack.c.b16 %v375, %v374
  %v390 = vpack.c.b16 %v377, %v376
  %v391 = vpack.c.b16 %v379, %v378
  %v392 = vpack.c.b16 %v381, %v380
  %v393 = vpack.c.b16 %v383, %v382
  %v394 = vpack.c.b16 %v385, %v384
  %v395 = vpack.c.b16 %v387, %v386
  %404 = vmatprep.subr.bf16.mxu0 0
  %405 = vmatpush1.bf16.msra.mxu0 %v388
  %406 = vmatprep.subr.bf16.mxu0 0
  %407 = vmatpush1.bf16.msra.mxu0 %v389
  %408 = vmatprep.subr.bf16.mxu0 0
  %409 = vmatpush1.bf16.msra.mxu0 %v390
  %410 = vmatprep.subr.bf16.mxu0 0
  %411 = vmatpush1.bf16.msra.mxu0 %v391
  %412 = vmatprep.subr.bf16.mxu0 0
  %413 = vmatpush1.bf16.msra.mxu0 %v392
  %414 = vmatprep.subr.bf16.mxu0 0
  %415 = vmatpush1.bf16.msra.mxu0 %v393
  %416 = vmatprep.subr.bf16.mxu0 0
  %417 = vmatpush1.bf16.msra.mxu0 %v394
  %418 = vmatprep.subr.bf16.mxu0 0
  %419 = vmatpush1.bf16.msra.mxu0 %v395
  %420 = vmatprep.subr.bf16.mxu0 0
  %421 = vmatpush1.bf16.msra.mxu0 0
  %422 = vmatprep.subr.bf16.mxu0 0
  %423 = vmatpush1.bf16.msra.mxu0 0
  %424 = vmatprep.subr.bf16.mxu0 0
  %425 = vmatpush1.bf16.msra.mxu0 0
  %426 = vmatprep.subr.bf16.mxu0 0
  %427 = vmatpush1.bf16.msra.mxu0 0
  %428 = vmatprep.subr.bf16.mxu0 0
  %429 = vmatpush1.bf16.msra.mxu0 0
  %430 = vmatprep.subr.bf16.mxu0 0
  %431 = vmatpush1.bf16.msra.mxu0 0
  %432 = vmatprep.subr.bf16.mxu0 0
  %433 = vmatpush1.bf16.msra.mxu0 0
  %434 = vmatprep.subr.bf16.mxu0 0
  %435 = vmatpush1.bf16.msra.mxu0 0
  %436 = vmatprep.mubr.bf16.mxu0 0
  %437 = vmatmul.mubr.bf16.gmra.mrb[0].mxu0 %v337
  %v438 = vpop.f32.mrb[0].mxu0
  %v439 = vadd.f32 0.0, %v438
  %v440 = vpop.f32.mrb[0].mxu0
  %v441 = vpop.f32.mrb[0].mxu0
  %v442 = vadd.f32 0.0, %v441
  %v443 = vpop.f32.mrb[0].mxu0
  %444 = vmatprep.mubr.bf16.mxu0 0
  %445 = vmatmul.mubr.bf16.gmra.mrb[0].mxu0 %v338
  %v446 = vpop.f32.mrb[0].mxu0
  %v447 = vadd.f32 0.0, %v446
  %v448 = vpop.f32.mrb[0].mxu0
  %v449 = vpop.f32.mrb[0].mxu0
  %v450 = vadd.f32 0.0, %v449
  %v451 = vpop.f32.mrb[0].mxu0
  %452 = vdwg.mxu0
  %v453 = vadd.f32 %v323, %v439
  %v454 = vadd.f32 %v326, %v442
  %v455 = vadd.f32 %v331, %v447
  %v456 = vadd.f32 %v334, %v450
  %vm457 = vcmp.gt.f32.partialorder %v453, 0.0
  %vm458 = vcmp.gt.f32.partialorder %v454, 0.0
  %vm459 = vcmp.gt.f32.partialorder %v455, 0.0
  %vm460 = vcmp.gt.f32.partialorder %v456, 0.0
  %v461 = vmin.f32 %v453, 0.0
  %v462 = vmin.f32 %v454, 0.0
  %v463 = vmin.f32 %v455, 0.0
  %v464 = vmin.f32 %v456, 0.0
  %v465 = vmul.f32 %v461, 1.442695
  %v466 = vpow.pop %v465
  %v467 = vmul.f32 %v462, 1.442695
  %v468 = vpow.pop %v467
  %v469 = vmul.f32 %v463, 1.442695
  %v470 = vpow.pop %v469
  %v471 = vmul.f32 %v464, 1.442695
  %v472 = vpow.pop %v471
  %v473 = vsub.f32 %v466, 1.0
  %v474 = vsub.f32 %v468, 1.0
  %v475 = vsub.f32 %v470, 1.0
  %v476 = vsub.f32 %v472, 1.0
  %v477 = vsel %vm457, %v453, %v473
  %v478 = vsel %vm458, %v454, %v474
  %v479 = vsel %vm459, %v455, %v475
  %v480 = vsel %vm460, %v456, %v476
  %v481 = vrot.slane %v477, 7
  %v482 = vrot.slane %v478, 7
  %v483 = vrot.slane %v479, 7
  %v484 = vrot.slane %v480, 7
  %v485 = vsel %vm84, %v483, %v484
  %v486 = vsel %vm84, %v482, %v483
  %v487 = vsel %vm84, %v481, %v482
  %v488 = vsel %vm84, %v484, %v481
  %v489 = vsel %vm72, 0.0, %v488
  %v490 = vsel %vm73, 0.0, %v487
  %v491 = vsel %vm74, 0.0, %v486
  %v492 = vsel %vm75, 0.0, %v485
  %v493 = vrot.slane %v477, 1
  %v494 = vrot.slane %v478, 1
  %v495 = vrot.slane %v479, 1
  %v496 = vrot.slane %v480, 1
  %v497 = vsel %vm97, %v495, %v496
  %v498 = vsel %vm97, %v494, %v495
  %v499 = vsel %vm97, %v493, %v494
  %v500 = vsel %vm97, %v496, %v493
  %v501 = vsel %vm76, 0.0, %v499
  %v502 = vsel %vm77, 0.0, %v498
  %v503 = vsel %vm78, 0.0, %v497
  %v504 = vsel %vm79, 0.0, %v500
  %v505 = vpack.c.bf16 %v490, %v489
  %v506 = vpack.c.bf16 %v492, %v491
  %v507 = vld [vmem:[%s2] sm:$0xf]
  %v508 = vld [vmem:[%s2 + $0x4] sm:$0xf]
  %v509 = vld [vmem:[%s2 + $0x8] sm:$0xf]
  %v510 = vld [vmem:[%s2 + $0xc] sm:$0xf]
  %v511 = vld [vmem:[%s2 + $0x10] sm:$0xf]
  %v512 = vld [vmem:[%s2 + $0x14] sm:$0xf]
  %v513 = vld [vmem:[%s2 + $0x18] sm:$0xf]
  %v514 = vld [vmem:[%s2 + $0x1c] sm:$0xf]
  %v515 = vld [vmem:[%s2 + $0x20] sm:$0xf]
  %v516 = vld [vmem:[%s2 + $0x24] sm:$0xf]
  %v517 = vld [vmem:[%s2 + $0x28] sm:$0xf]
  %v518 = vld [vmem:[%s2 + $0x2c] sm:$0xf]
  %v519 = vld [vmem:[%s2 + $0x30] sm:$0xf]
  %v520 = vld [vmem:[%s2 + $0x34] sm:$0xf]
  %v521 = vld [vmem:[%s2 + $0x38] sm:$0xf]
  %v522 = vld [vmem:[%s2 + $0x3c] sm:$0xf]
  %v523 = vpack.c.bf16 %v478, %v477
  %v524 = vpack.c.bf16 %v480, %v479
  %s525 = scalar_lea.vmem %s2, 64
  %v526 = vld [vmem:[%s525] sm:$0xf]
  %v527 = vld [vmem:[%s525 + $0x4] sm:$0xf]
  %v528 = vld [vmem:[%s525 + $0x8] sm:$0xf]
  %v529 = vld [vmem:[%s525 + $0xc] sm:$0xf]
  %v530 = vld [vmem:[%s525 + $0x10] sm:$0xf]
  %v531 = vld [vmem:[%s525 + $0x14] sm:$0xf]
  %v532 = vld [vmem:[%s525 + $0x18] sm:$0xf]
  %v533 = vld [vmem:[%s525 + $0x1c] sm:$0xf]
  %v534 = vld [vmem:[%s525 + $0x20] sm:$0xf]
  %v535 = vld [vmem:[%s525 + $0x24] sm:$0xf]
  %v536 = vld [vmem:[%s525 + $0x28] sm:$0xf]
  %v537 = vld [vmem:[%s525 + $0x2c] sm:$0xf]
  %v538 = vld [vmem:[%s525 + $0x30] sm:$0xf]
  %v539 = vld [vmem:[%s525 + $0x34] sm:$0xf]
  %v540 = vld [vmem:[%s525 + $0x38] sm:$0xf]
  %v541 = vld [vmem:[%s525 + $0x3c] sm:$0xf]
  %v558 = vunpack.c.l.b16 %v526
  %v559 = vunpack.c.l.b16 %v527
  %v560 = vunpack.c.l.b16 %v528
  %v561 = vunpack.c.l.b16 %v529
  %v562 = vunpack.c.l.b16 %v530
  %v563 = vunpack.c.l.b16 %v531
  %v564 = vunpack.c.l.b16 %v532
  %v565 = vunpack.c.l.b16 %v533
  %v566 = vunpack.c.l.b16 %v534
  %v567 = vunpack.c.l.b16 %v535
  %v568 = vunpack.c.l.b16 %v536
  %v569 = vunpack.c.l.b16 %v537
  %v570 = vunpack.c.l.b16 %v538
  %v571 = vunpack.c.l.b16 %v539
  %v572 = vunpack.c.l.b16 %v540
  %v573 = vunpack.c.l.b16 %v541
  %v574 = vpack.c.b16 %v559, %v558
  %v575 = vpack.c.b16 %v561, %v560
  %v576 = vpack.c.b16 %v563, %v562
  %v577 = vpack.c.b16 %v565, %v564
  %v578 = vpack.c.b16 %v567, %v566
  %v579 = vpack.c.b16 %v569, %v568
  %v580 = vpack.c.b16 %v571, %v570
  %v581 = vpack.c.b16 %v573, %v572
  %590 = vmatprep.subr.bf16.mxu0 0
  %591 = vmatpush1.bf16.msra.mxu0 %v574
  %592 = vmatprep.subr.bf16.mxu0 0
  %593 = vmatpush1.bf16.msra.mxu0 %v575
  %594 = vmatprep.subr.bf16.mxu0 0
  %595 = vmatpush1.bf16.msra.mxu0 %v576
  %596 = vmatprep.subr.bf16.mxu0 0
  %597 = vmatpush1.bf16.msra.mxu0 %v577
  %598 = vmatprep.subr.bf16.mxu0 0
  %599 = vmatpush1.bf16.msra.mxu0 %v578
  %600 = vmatprep.subr.bf16.mxu0 0
  %601 = vmatpush1.bf16.msra.mxu0 %v579
  %602 = vmatprep.subr.bf16.mxu0 0
  %603 = vmatpush1.bf16.msra.mxu0 %v580
  %604 = vmatprep.subr.bf16.mxu0 0
  %605 = vmatpush1.bf16.msra.mxu0 %v581
  %606 = vmatprep.subr.bf16.mxu0 0
  %607 = vmatpush1.bf16.msra.mxu0 0
  %608 = vmatprep.subr.bf16.mxu0 0
  %609 = vmatpush1.bf16.msra.mxu0 0
  %610 = vmatprep.subr.bf16.mxu0 0
  %611 = vmatpush1.bf16.msra.mxu0 0
  %612 = vmatprep.subr.bf16.mxu0 0
  %613 = vmatpush1.bf16.msra.mxu0 0
  %614 = vmatprep.subr.bf16.mxu0 0
  %615 = vmatpush1.bf16.msra.mxu0 0
  %616 = vmatprep.subr.bf16.mxu0 0
  %617 = vmatpush1.bf16.msra.mxu0 0
  %618 = vmatprep.subr.bf16.mxu0 0
  %619 = vmatpush1.bf16.msra.mxu0 0
  %620 = vmatprep.subr.bf16.mxu0 0
  %621 = vmatpush1.bf16.msra.mxu0 0
  %622 = vmatprep.mubr.bf16.mxu0 0
  %623 = vmatmul.mubr.bf16.gmra.mrb[0].mxu0 %v523
  %v624 = vpop.f32.mrb[0].mxu0
  %v625 = vadd.f32 0.0, %v624
  %v626 = vpop.f32.mrb[0].mxu0
  %v627 = vpop.f32.mrb[0].mxu0
  %v628 = vadd.f32 0.0, %v627
  %v629 = vpop.f32.mrb[0].mxu0
  %630 = vmatprep.mubr.bf16.mxu0 0
  %631 = vmatmul.mubr.bf16.gmra.mrb[0].mxu0 %v524
  %v632 = vpop.f32.mrb[0].mxu0
  %v633 = vadd.f32 0.0, %v632
  %v634 = vpop.f32.mrb[0].mxu0
  %v635 = vpop.f32.mrb[0].mxu0
  %v636 = vadd.f32 0.0, %v635
  %v637 = vpop.f32.mrb[0].mxu0
  %638 = vdwg.mxu0
  %v655 = vunpack.c.l.b16 %v507
  %v656 = vunpack.c.l.b16 %v508
  %v657 = vunpack.c.l.b16 %v509
  %v658 = vunpack.c.l.b16 %v510
  %v659 = vunpack.c.l.b16 %v511
  %v660 = vunpack.c.l.b16 %v512
  %v661 = vunpack.c.l.b16 %v513
  %v662 = vunpack.c.l.b16 %v514
  %v663 = vunpack.c.l.b16 %v515
  %v664 = vunpack.c.l.b16 %v516
  %v665 = vunpack.c.l.b16 %v517
  %v666 = vunpack.c.l.b16 %v518
  %v667 = vunpack.c.l.b16 %v519
  %v668 = vunpack.c.l.b16 %v520
  %v669 = vunpack.c.l.b16 %v521
  %v670 = vunpack.c.l.b16 %v522
  %v671 = vpack.c.b16 %v656, %v655
  %v672 = vpack.c.b16 %v658, %v657
  %v673 = vpack.c.b16 %v660, %v659
  %v674 = vpack.c.b16 %v662, %v661
  %v675 = vpack.c.b16 %v664, %v663
  %v676 = vpack.c.b16 %v666, %v665
  %v677 = vpack.c.b16 %v668, %v667
  %v678 = vpack.c.b16 %v670, %v669
  %687 = vmatprep.subr.bf16.mxu0 0
  %688 = vmatpush1.bf16.msra.mxu0 %v671
  %689 = vmatprep.subr.bf16.mxu0 0
  %690 = vmatpush1.bf16.msra.mxu0 %v672
  %691 = vmatprep.subr.bf16.mxu0 0
  %692 = vmatpush1.bf16.msra.mxu0 %v673
  %693 = vmatprep.subr.bf16.mxu0 0
  %694 = vmatpush1.bf16.msra.mxu0 %v674
  %695 = vmatprep.subr.bf16.mxu0 0
  %696 = vmatpush1.bf16.msra.mxu0 %v675
  %697 = vmatprep.subr.bf16.mxu0 0
  %698 = vmatpush1.bf16.msra.mxu0 %v676
  %699 = vmatprep.subr.bf16.mxu0 0
  %700 = vmatpush1.bf16.msra.mxu0 %v677
  %701 = vmatprep.subr.bf16.mxu0 0
  %702 = vmatpush1.bf16.msra.mxu0 %v678
  %703 = vmatprep.subr.bf16.mxu0 0
  %704 = vmatpush1.bf16.msra.mxu0 0
  %705 = vmatprep.subr.bf16.mxu0 0
  %706 = vmatpush1.bf16.msra.mxu0 0
  %707 = vmatprep.subr.bf16.mxu0 0
  %708 = vmatpush1.bf16.msra.mxu0 0
  %709 = vmatprep.subr.bf16.mxu0 0
  %710 = vmatpush1.bf16.msra.mxu0 0
  %711 = vmatprep.subr.bf16.mxu0 0
  %712 = vmatpush1.bf16.msra.mxu0 0
  %713 = vmatprep.subr.bf16.mxu0 0
  %714 = vmatpush1.bf16.msra.mxu0 0
  %715 = vmatprep.subr.bf16.mxu0 0
  %716 = vmatpush1.bf16.msra.mxu0 0
  %717 = vmatprep.subr.bf16.mxu0 0
  %718 = vmatpush1.bf16.msra.mxu0 0
  %719 = vmatprep.mubr.bf16.mxu0 0
  %720 = vmatmul.mubr.bf16.gmra.mrb[0].mxu0 %v505
  %v721 = vpop.f32.mrb[0].mxu0
  %v722 = vadd.f32 %v625, %v721
  %v723 = vpop.f32.mrb[0].mxu0
  %v724 = vpop.f32.mrb[0].mxu0
  %v725 = vadd.f32 %v628, %v724
  %v726 = vpop.f32.mrb[0].mxu0
  %727 = vmatprep.mubr.bf16.mxu0 0
  %728 = vmatmul.mubr.bf16.gmra.mrb[0].mxu0 %v506
  %v729 = vpop.f32.mrb[0].mxu0
  %v730 = vadd.f32 %v633, %v729
  %v731 = vpop.f32.mrb[0].mxu0
  %v732 = vpop.f32.mrb[0].mxu0
  %v733 = vadd.f32 %v636, %v732
  %v734 = vpop.f32.mrb[0].mxu0
  %735 = vdwg.mxu0
  %v736 = vpack.c.bf16 %v502, %v501
  %v737 = vpack.c.bf16 %v504, %v503
  %s738 = scalar_lea.vmem %s2, 128
  %v739 = vld [vmem:[%s738] sm:$0xf]
  %v740 = vld [vmem:[%s738 + $0x4] sm:$0xf]
  %v741 = vld [vmem:[%s738 + $0x8] sm:$0xf]
  %v742 = vld [vmem:[%s738 + $0xc] sm:$0xf]
  %v743 = vld [vmem:[%s738 + $0x10] sm:$0xf]
  %v744 = vld [vmem:[%s738 + $0x14] sm:$0xf]
  %v745 = vld [vmem:[%s738 + $0x18] sm:$0xf]
  %v746 = vld [vmem:[%s738 + $0x1c] sm:$0xf]
  %v747 = vld [vmem:[%s738 + $0x20] sm:$0xf]
  %v748 = vld [vmem:[%s738 + $0x24] sm:$0xf]
  %v749 = vld [vmem:[%s738 + $0x28] sm:$0xf]
  %v750 = vld [vmem:[%s738 + $0x2c] sm:$0xf]
  %v751 = vld [vmem:[%s738 + $0x30] sm:$0xf]
  %v752 = vld [vmem:[%s738 + $0x34] sm:$0xf]
  %v753 = vld [vmem:[%s738 + $0x38] sm:$0xf]
  %v754 = vld [vmem:[%s738 + $0x3c] sm:$0xf]
  %v771 = vunpack.c.l.b16 %v739
  %v772 = vunpack.c.l.b16 %v740
  %v773 = vunpack.c.l.b16 %v741
  %v774 = vunpack.c.l.b16 %v742
  %v775 = vunpack.c.l.b16 %v743
  %v776 = vunpack.c.l.b16 %v744
  %v777 = vunpack.c.l.b16 %v745
  %v778 = vunpack.c.l.b16 %v746
  %v779 = vunpack.c.l.b16 %v747
  %v780 = vunpack.c.l.b16 %v748
  %v781 = vunpack.c.l.b16 %v749
  %v782 = vunpack.c.l.b16 %v750
  %v783 = vunpack.c.l.b16 %v751
  %v784 = vunpack.c.l.b16 %v752
  %v785 = vunpack.c.l.b16 %v753
  %v786 = vunpack.c.l.b16 %v754
  %v787 = vpack.c.b16 %v772, %v771
  %v788 = vpack.c.b16 %v774, %v773
  %v789 = vpack.c.b16 %v776, %v775
  %v790 = vpack.c.b16 %v778, %v777
  %v791 = vpack.c.b16 %v780, %v779
  %v792 = vpack.c.b16 %v782, %v781
  %v793 = vpack.c.b16 %v784, %v783
  %v794 = vpack.c.b16 %v786, %v785
  %803 = vmatprep.subr.bf16.mxu0 0
  %804 = vmatpush1.bf16.msra.mxu0 %v787
  %805 = vmatprep.subr.bf16.mxu0 0
  %806 = vmatpush1.bf16.msra.mxu0 %v788
  %807 = vmatprep.subr.bf16.mxu0 0
  %808 = vmatpush1.bf16.msra.mxu0 %v789
  %809 = vmatprep.subr.bf16.mxu0 0
  %810 = vmatpush1.bf16.msra.mxu0 %v790
  %811 = vmatprep.subr.bf16.mxu0 0
  %812 = vmatpush1.bf16.msra.mxu0 %v791
  %813 = vmatprep.subr.bf16.mxu0 0
  %814 = vmatpush1.bf16.msra.mxu0 %v792
  %815 = vmatprep.subr.bf16.mxu0 0
  %816 = vmatpush1.bf16.msra.mxu0 %v793
  %817 = vmatprep.subr.bf16.mxu0 0
  %818 = vmatpush1.bf16.msra.mxu0 %v794
  %819 = vmatprep.subr.bf16.mxu0 0
  %820 = vmatpush1.bf16.msra.mxu0 0
  %821 = vmatprep.subr.bf16.mxu0 0
  %822 = vmatpush1.bf16.msra.mxu0 0
  %823 = vmatprep.subr.bf16.mxu0 0
  %824 = vmatpush1.bf16.msra.mxu0 0
  %825 = vmatprep.subr.bf16.mxu0 0
  %826 = vmatpush1.bf16.msra.mxu0 0
  %827 = vmatprep.subr.bf16.mxu0 0
  %828 = vmatpush1.bf16.msra.mxu0 0
  %829 = vmatprep.subr.bf16.mxu0 0
  %830 = vmatpush1.bf16.msra.mxu0 0
  %831 = vmatprep.subr.bf16.mxu0 0
  %832 = vmatpush1.bf16.msra.mxu0 0
  %833 = vmatprep.subr.bf16.mxu0 0
  %834 = vmatpush1.bf16.msra.mxu0 0
  %835 = vmatprep.mubr.bf16.mxu0 0
  %836 = vmatmul.mubr.bf16.gmra.mrb[0].mxu0 %v736
  %v837 = vpop.f32.mrb[0].mxu0
  %v838 = vadd.f32 0.0, %v837
  %v839 = vpop.f32.mrb[0].mxu0
  %v840 = vpop.f32.mrb[0].mxu0
  %v841 = vadd.f32 0.0, %v840
  %v842 = vpop.f32.mrb[0].mxu0
  %843 = vmatprep.mubr.bf16.mxu0 0
  %844 = vmatmul.mubr.bf16.gmra.mrb[0].mxu0 %v737
  %v845 = vpop.f32.mrb[0].mxu0
  %v846 = vadd.f32 0.0, %v845
  %v847 = vpop.f32.mrb[0].mxu0
  %v848 = vpop.f32.mrb[0].mxu0
  %v849 = vadd.f32 0.0, %v848
  %v850 = vpop.f32.mrb[0].mxu0
  %851 = vdwg.mxu0
  %v852 = vadd.f32 %v722, %v838
  %v853 = vadd.f32 %v725, %v841
  %v854 = vadd.f32 %v730, %v846
  %v855 = vadd.f32 %v733, %v849
  %v856 = vadd.f32 %v15, %v852
  %v857 = vadd.f32 %v16, %v853
  %v858 = vadd.f32 %v17, %v854
  %v859 = vadd.f32 %v18, %v855
  %860 = vst [vmem:[%s3] sm:$0xff] %v856
  %861 = vst [vmem:[%s3 + $0x8] sm:$0xff] %v857
  %862 = vst [vmem:[%s3 + $0x10] sm:$0xff] %v858
  %863 = vst [vmem:[%s3 + $0x18] sm:$0xff] %v859
  // Predicated region
  $region14: #{resnet_block2_nhwc.1} parent=0 // pred_check
    _
  $region15: #{resnet_block2_nhwc.1} parent=0 // pred_check_branch
    %865 = sbr.rel (0) target = $region17
  $region16: #{resnet_block2_nhwc.1} parent=0 // pred_region
    _
  $region17: #{resnet_block2_nhwc.1} parent=0 // pred_fallthru
    _
  // Predicated region
  $region18: #{resnet_block2_nhwc.1} parent=0 // pred_check
    _
  $region19: #{resnet_block2_nhwc.1} parent=0 // pred_check_branch
    %867 = sbr.rel (0) target = $region21
  $region20: #{resnet_block2_nhwc.1} parent=0 // pred_region
    _
  $region21: #{resnet_block2_nhwc.1} parent=0 // pred_fallthru
    _

</llo_original>
